<compile_context>
chip_gen: v7x
topology: tpu7x:2x2x1
jax: 0.10.0
libtpu: 0.0.40
codegen_flags: <defaults>
</compile_context>

<pallas_src>
import functools

import jax
import jax.numpy as jnp
from jax import lax
from jax.experimental import pallas as pl
from jax.experimental.pallas import tpu as pltpu

LN_EPS = 1e-5                            # PyTorch nn.LayerNorm default
_SMALL_TABLE_BYTES = 2 * 1024 * 1024     # one-hot MXU path if padded table fits this
_VMEM_BUDGET_BYTES = 24 * 1024 * 1024    # budget for the ~6 pipelined (tm, Hp) buffers


def _layernorm(emb, gamma, beta, h_true):
    """LayerNorm over the true hidden width. Padded lanes of `emb` are zero, so
    sums over the padded width equal sums over the true width; padded output lanes
    are zeroed by gamma/beta padding and sliced off by the wrapper."""
    inv_h = 1.0 / float(h_true)
    mean = jnp.sum(emb, axis=-1, keepdims=True) * inv_h
    ex2 = jnp.sum(emb * emb, axis=-1, keepdims=True) * inv_h
    var = jnp.maximum(ex2 - mean * mean, 0.0)
    return (emb - mean) * lax.rsqrt(var + LN_EPS) * gamma + beta


# --------------------------------------------------------------------------- #
# Small-vocab fast path: word table resident in VMEM, gather = one-hot matmul. #
# --------------------------------------------------------------------------- #
def _emb_kernel_onehot(tok_ref,                 # (tm, 1) int32 VMEM
                       wemb_ref,                # (V, Hp) f32 VMEM (resident)
                       pos_ref,                 # (tm, Hp) f32 VMEM (auto-pipelined)
                       gamma_ref, beta_ref,     # (1, Hp) f32
                       out_ref,                 # (tm, Hp) f32
                       *, h_true, vocab):
    tok = tok_ref[...]                                              # (tm, 1)
    iota = lax.broadcasted_iota(jnp.int32, (tok.shape[0], vocab), 1)
    onehot = (tok == iota).astype(jnp.float32)                      # (tm, V)
    wrows = jnp.dot(onehot, wemb_ref[...],
                    preferred_element_type=jnp.float32)             # (tm, Hp) on MXU
    emb = wrows + pos_ref[...]
    out_ref[...] = _layernorm(emb, gamma_ref[...], beta_ref[...],
                              h_true).astype(out_ref.dtype)


# --------------------------------------------------------------------------- #
# Large-vocab path: HBM row gathers, double-buffered across seq tiles.         #
# --------------------------------------------------------------------------- #
def _emb_kernel_gather(tok_ref,                 # scalar prefetch SMEM: (B*Sp,) int32
                       wemb_hbm,                # (V, Hp) f32, HBM (pl.ANY)
                       pos_ref,                 # (tm, Hp) f32, auto-pipelined
                       gamma_ref, beta_ref,     # (1, Hp) f32
                       out_ref,                 # (tm, Hp) f32
                       wbuf, sem,               # scratch: VMEM (2, tm, Hp), DMA sem (2,)
                       *, h_true, tm, n_s):
    b = pl.program_id(0)
    s = pl.program_id(1)

    def issue(si):
        # Gather the tm word rows of seq-tile (b, si) into slot si & 1.
        slot = si & 1
        base = pl.multiple_of(b * (n_s * tm) + si * tm, tm)

        def body(r, carry):
            tid = tok_ref[base + r]
            pltpu.make_async_copy(wemb_hbm.at[pl.ds(tid, 1)],
                                  wbuf.at[slot, pl.ds(r, 1)],
                                  sem.at[slot]).start()
            return carry

        lax.fori_loop(0, tm, body, 0, unroll=8)

    # Prime the pipeline at the start of every batch row.
    @pl.when(s == 0)
    def _():
        issue(0)

    # Kick off the NEXT tile's gathers before waiting on the current one,
    # so the HBM gather latency overlaps this tile's LayerNorm.
    @pl.when(s + 1 < n_s)
    def _():
        issue(s + 1)

    slot = s & 1
    # One batched wait per tile: descriptor byte count (tm * Hp * 4) matches the
    # total of the tm issued single-row copies on sem[slot].
    pltpu.make_async_copy(wbuf.at[1 - slot], wbuf.at[slot], sem.at[slot]).wait()

    emb = wbuf[slot] + pos_ref[...]                                 # (tm, Hp)
    out_ref[...] = _layernorm(emb, gamma_ref[...], beta_ref[...],
                              h_true).astype(out_ref.dtype)


# --------------------------------------------------------------------------- #
# Wrappers.                                                                     #
# --------------------------------------------------------------------------- #
def prepare_decoder_embedding_params(word_emb, pos_emb, gamma, beta):
    """Pad tables / LN params to a lane-dense hidden width. Call ONCE at model init
    so the (V, Hp) vocab-table copy is not re-materialized on every forward."""
    V, H = word_emb.shape
    Hp = max(128, ((H + 127) // 128) * 128)
    pad = Hp - H
    if pad:
        word_emb = jnp.pad(word_emb, ((0, 0), (0, pad)))
        pos_emb = jnp.pad(pos_emb, ((0, 0), (0, pad)))
        gamma = jnp.pad(gamma, (0, pad))
        beta = jnp.pad(beta, (0, pad))
    return {
        "word_emb": word_emb,                 # (V, Hp)
        "pos_emb": pos_emb,                   # (P, Hp)
        "gamma": gamma.reshape(1, Hp),
        "beta": beta.reshape(1, Hp),
        "hidden": H,
    }


def _pick_tm(S, Hp):
    # ~6 pipelined (tm, Hp) f32 buffers live at once (gather scratch x2, pos x2,
    # out x2); keep them under _VMEM_BUDGET_BYTES so v7x's 64 MiB VMEM is safe.
    cap = max(8, (_VMEM_BUDGET_BYTES // (6 * Hp * 4)) // 8 * 8)
    tm = min(256, cap)
    if S < tm:
        tm = max(8, ((S + 7) // 8) * 8)
    return tm


def decoder_embeddings_prepared(tokens, params, *, force_path=None, tile_rows=None):
    word_emb = params["word_emb"]
    pos_emb = params["pos_emb"]
    gamma2 = params["gamma"]
    beta2 = params["beta"]
    H = params["hidden"]

    B, S = tokens.shape
    V, Hp = word_emb.shape
    P = pos_emb.shape[0]
    assert S <= P, "sequence length must not exceed max_position_embeddings"

    tm = tile_rows if tile_rows is not None else _pick_tm(S, Hp)
    n_s = -(-S // tm)          # cdiv
    Sp = n_s * tm

    # Position rows covering [0, Sp); only pad if the table is shorter than Sp.
    pos_use = pos_emb if P >= Sp else jnp.pad(pos_emb, ((0, Sp - P), (0, 0)))

    # Clamp token ids so an out-of-range id never drives an OOB HBM gather.
    # (PyTorch's nn.Embedding would raise; here it silently maps to a valid row.)
    tok = jnp.clip(tokens.astype(jnp.int32), 0, V - 1)
    if Sp != S:
        tok = jnp.pad(tok, ((0, 0), (0, Sp - S)))
    tok_flat = tok.reshape(B * Sp)

    small_table = (V * Hp * 4) <= _SMALL_TABLE_BYTES
    use_onehot = (force_path == "onehot") or (force_path is None and small_table)

    grid = (B, n_s)
    vmem_limit = 64 * 1024 * 1024

    if use_onehot:
        tok2d = tok_flat.reshape(B * Sp, 1)
        kernel = functools.partial(_emb_kernel_onehot, h_true=H, vocab=V)
        out = pl.pallas_call(
            kernel,
            out_shape=jax.ShapeDtypeStruct((B * Sp, Hp), jnp.float32),
            grid_spec=pltpu.PrefetchScalarGridSpec(
                num_scalar_prefetch=0,
                grid=grid,
                in_specs=[
                    pl.BlockSpec((tm, 1), lambda b, s: (b * n_s + s, 0)),   # tokens
                    pl.BlockSpec((V, Hp), lambda b, s: (0, 0)),             # word table
                    pl.BlockSpec((tm, Hp), lambda b, s: (s, 0)),            # pos tile
                    pl.BlockSpec((1, Hp), lambda b, s: (0, 0)),             # gamma
                    pl.BlockSpec((1, Hp), lambda b, s: (0, 0)),             # beta
                ],
                out_specs=pl.BlockSpec((tm, Hp), lambda b, s: (b * n_s + s, 0)),
            ),
            compiler_params=pltpu.CompilerParams(
                dimension_semantics=("parallel", "parallel"),
                vmem_limit_bytes=vmem_limit),
        )(tok2d, word_emb, pos_use, gamma2, beta2)
    else:
        kernel = functools.partial(_emb_kernel_gather, h_true=H, tm=tm, n_s=n_s)
        out = pl.pallas_call(
            kernel,
            out_shape=jax.ShapeDtypeStruct((B * Sp, Hp), jnp.float32),
            grid_spec=pltpu.PrefetchScalarGridSpec(
                num_scalar_prefetch=1,
                grid=grid,
                in_specs=[
                    pl.BlockSpec(memory_space=pl.ANY),                       # word (HBM)
                    pl.BlockSpec((tm, Hp), lambda b, s, tok: (s, 0)),        # pos tile
                    pl.BlockSpec((1, Hp), lambda b, s, tok: (0, 0)),         # gamma
                    pl.BlockSpec((1, Hp), lambda b, s, tok: (0, 0)),         # beta
                ],
                out_specs=pl.BlockSpec((tm, Hp),
                                       lambda b, s, tok: (b * n_s + s, 0)),
                scratch_shapes=[
                    pltpu.VMEM((2, tm, Hp), jnp.float32),    # double-buffered word rows
                    pltpu.SemaphoreType.DMA((2,)),           # one DMA sem per slot
                ],
            ),
            compiler_params=pltpu.CompilerParams(
                dimension_semantics=("parallel", "arbitrary"),
                vmem_limit_bytes=vmem_limit),
        )(tok_flat, word_emb, pos_use, gamma2, beta2)

    return out.reshape(B, Sp, Hp)[:, :S, :H]


def decoder_embeddings(tokens, word_emb, pos_emb, gamma, beta, *, force_path=None):
    """Convenience wrapper. For repeated calls, run prepare_decoder_embedding_params
    once and call decoder_embeddings_prepared to avoid re-padding the vocab table."""
    params = prepare_decoder_embedding_params(word_emb, pos_emb, gamma, beta)
    return decoder_embeddings_prepared(tokens, params, force_path=force_path)


def decoder_embeddings_ref(tokens, word_emb, pos_emb, gamma, beta):
    """Pure-JAX reference (mirrors the PyTorch forward)."""
    B, S = tokens.shape
    input_embeds = word_emb[tokens]                        # (B, S, H)
    position_embeds = pos_emb[jnp.arange(S)][None]         # (1, S, H)
    emb = input_embeds + position_embeds
    mean = jnp.mean(emb, axis=-1, keepdims=True)
    var = jnp.mean((emb - mean) ** 2, axis=-1, keepdims=True)
    return (emb - mean) / jnp.sqrt(var + LN_EPS) * gamma + beta


if __name__ == "__main__":
    # Small shapes consistent with the module's forward.
    vocab_size = 32
    hidden_dim = 32
    max_position_embeddings = 16
    batch = 2
    seq = 8

    key = jax.random.PRNGKey(0)
    k_tok, k_w, k_p, k_tok2, k_w2, k_p2 = jax.random.split(key, 6)

    tokens = jax.random.randint(k_tok, (batch, seq), 0, vocab_size, dtype=jnp.int32)
    word_emb = jax.random.normal(k_w, (vocab_size, hidden_dim), dtype=jnp.float32)
    pos_emb = jax.random.normal(k_p, (max_position_embeddings, hidden_dim),
                                dtype=jnp.float32)
    gamma = jnp.ones((hidden_dim,), dtype=jnp.float32)   # nn.LayerNorm default init
    beta = jnp.zeros((hidden_dim,), dtype=jnp.float32)

    params = prepare_decoder_embedding_params(word_emb, pos_emb, gamma, beta)
    ref = decoder_embeddings_ref(tokens, word_emb, pos_emb, gamma, beta)

    # 1) Small-vocab fast path (one-hot matmul on the MXU).
    out_fast = jax.block_until_ready(decoder_embeddings_prepared(tokens, params))
    assert out_fast.shape == (batch, seq, hidden_dim)
    assert jnp.allclose(out_fast, ref, atol=2e-5, rtol=2e-5), "onehot path mismatch"

    # 2) Large-vocab path (HBM row-gather DMAs) forced, single seq tile.
    out_gather = jax.block_until_ready(
        decoder_embeddings_prepared(tokens, params, force_path="gather"))
    assert jnp.allclose(out_gather, ref, atol=2e-5, rtol=2e-5), "gather path mismatch"

    # 3) Large-vocab path with multiple seq tiles to exercise the cross-tile
    #    double-buffered gather pipeline (n_s > 1).
    V2, S2, P2 = 64, 32, 32
    tokens2 = jax.random.randint(k_tok2, (batch, S2), 0, V2, dtype=jnp.int32)
    word_emb2 = jax.random.normal(k_w2, (V2, hidden_dim), dtype=jnp.float32)
    pos_emb2 = jax.random.normal(k_p2, (P2, hidden_dim), dtype=jnp.float32)
    params2 = prepare_decoder_embedding_params(word_emb2, pos_emb2, gamma, beta)
    ref2 = decoder_embeddings_ref(tokens2, word_emb2, pos_emb2, gamma, beta)
    out2 = jax.block_until_ready(
        decoder_embeddings_prepared(tokens2, params2, force_path="gather",
                                    tile_rows=16))
    assert out2.shape == (batch, S2, hidden_dim)
    assert jnp.allclose(out2, ref2, atol=2e-5, rtol=2e-5), "pipelined gather mismatch"

    print("KERNEL_OK")
</pallas_src>

<mosaic_0001>
module attributes {stable_mosaic.version = 11 : i64} {
  func.func @_emb_kernel_onehot(%arg0: i32, %arg1: i32, %arg2: memref<8x1xi32, #tpu.memory_space<vmem>>, %arg3: memref<32x128xf32, #tpu.memory_space<vmem>>, %arg4: memref<8x128xf32, #tpu.memory_space<vmem>>, %arg5: memref<1x128xf32, #tpu.memory_space<vmem>>, %arg6: memref<1x128xf32, #tpu.memory_space<vmem>>, %arg7: memref<8x128xf32, #tpu.memory_space<vmem>>) attributes {dimension_semantics = [#tpu.dimension_semantics<parallel>, #tpu.dimension_semantics<parallel>], iteration_bounds = array<i64: 2, 1>, scalar_prefetch = 0 : i64, scratch_operands = 0 : i64, tpu.core_type = #tpu.core_type<tc>, window_params = [{transform_indices = @transform_0, window_bounds = array<i64: 8, 1>}, {pipeline_mode = #tpu.pipeline_mode<synchronous>, transform_indices = @transform_1, window_bounds = array<i64: 32, 128>}, {transform_indices = @transform_2, window_bounds = array<i64: 8, 128>}, {pipeline_mode = #tpu.pipeline_mode<synchronous>, transform_indices = @transform_3, window_bounds = array<i64: 1, 128>}, {pipeline_mode = #tpu.pipeline_mode<synchronous>, transform_indices = @transform_4, window_bounds = array<i64: 1, 128>}, {transform_indices = @transform_5, window_bounds = array<i64: 8, 128>}]} {
    %c0 = arith.constant 0 : index
    %c0_0 = arith.constant 0 : index
    %0 = vector.load %arg2[%c0, %c0_0] : memref<8x1xi32, #tpu.memory_space<vmem>>, vector<8x1xi32>
    %1 = tpu.iota {dimensions = array<i32: 1>} : vector<8x32xi32>
    %2 = vector.broadcast %0 : vector<8x1xi32> to vector<8x32xi32>
    %3 = arith.cmpi eq, %2, %1 : vector<8x32xi32>
    %4 = arith.extui %3 : vector<8x32xi1> to vector<8x32xi32>
    %5 = arith.sitofp %4 : vector<8x32xi32> to vector<8x32xf32>
    %c0_1 = arith.constant 0 : index
    %c0_2 = arith.constant 0 : index
    %6 = vector.load %arg3[%c0_1, %c0_2] : memref<32x128xf32, #tpu.memory_space<vmem>>, vector<32x128xf32>
    %cst = arith.constant dense<0.000000e+00> : vector<8x128xf32>
    %7 = tpu.matmul %5, %6, %cst {dimension_numbers = #tpu.dot_dimension_numbers<[1], [0], [0], [1], [0, 0, 1, 1], [], []>} : vector<8x32xf32>, vector<32x128xf32>, vector<8x128xf32> -> vector<8x128xf32>
    %c0_3 = arith.constant 0 : index
    %c0_4 = arith.constant 0 : index
    %8 = vector.load %arg4[%c0_3, %c0_4] : memref<8x128xf32, #tpu.memory_space<vmem>>, vector<8x128xf32>
    %9 = arith.addf %7, %8 : vector<8x128xf32>
    %c0_5 = arith.constant 0 : index
    %c0_6 = arith.constant 0 : index
    %10 = vector.load %arg5[%c0_5, %c0_6] : memref<1x128xf32, #tpu.memory_space<vmem>>, vector<1x128xf32>
    %c0_7 = arith.constant 0 : index
    %c0_8 = arith.constant 0 : index
    %11 = vector.load %arg6[%c0_7, %c0_8] : memref<1x128xf32, #tpu.memory_space<vmem>>, vector<1x128xf32>
    %cst_9 = arith.constant dense<0.000000e+00> : vector<8xf32>
    %12 = vector.multi_reduction <add>, %9, %cst_9 [1] : vector<8x128xf32> to vector<8xf32>
    %13 = vector.shape_cast %12 : vector<8xf32> to vector<8x1xf32>
    %cst_10 = arith.constant 3.125000e-02 : f32
    %14 = vector.broadcast %cst_10 : f32 to vector<8x1xf32>
    %15 = arith.mulf %13, %14 : vector<8x1xf32>
    %16 = arith.mulf %9, %9 : vector<8x128xf32>
    %cst_11 = arith.constant dense<0.000000e+00> : vector<8xf32>
    %17 = vector.multi_reduction <add>, %16, %cst_11 [1] : vector<8x128xf32> to vector<8xf32>
    %18 = vector.shape_cast %17 : vector<8xf32> to vector<8x1xf32>
    %cst_12 = arith.constant 3.125000e-02 : f32
    %19 = vector.broadcast %cst_12 : f32 to vector<8x1xf32>
    %20 = arith.mulf %18, %19 : vector<8x1xf32>
    %21 = arith.mulf %15, %15 : vector<8x1xf32>
    %22 = arith.subf %20, %21 : vector<8x1xf32>
    %cst_13 = arith.constant 0.000000e+00 : f32
    %23 = vector.broadcast %cst_13 : f32 to vector<8x1xf32>
    %24 = arith.maximumf %22, %23 : vector<8x1xf32>
    %25 = vector.broadcast %15 : vector<8x1xf32> to vector<8x128xf32>
    %26 = arith.subf %9, %25 : vector<8x128xf32>
    %cst_14 = arith.constant 9.99999974E-6 : f32
    %27 = vector.broadcast %cst_14 : f32 to vector<8x1xf32>
    %28 = arith.addf %24, %27 : vector<8x1xf32>
    %29 = math.rsqrt %28 : vector<8x1xf32>
    %30 = vector.broadcast %29 : vector<8x1xf32> to vector<8x128xf32>
    %31 = arith.mulf %26, %30 : vector<8x128xf32>
    %32 = vector.broadcast %10 : vector<1x128xf32> to vector<8x128xf32>
    %33 = arith.mulf %31, %32 : vector<8x128xf32>
    %34 = vector.broadcast %11 : vector<1x128xf32> to vector<8x128xf32>
    %35 = arith.addf %33, %34 : vector<8x128xf32>
    %c0_15 = arith.constant 0 : index
    %c0_16 = arith.constant 0 : index
    %36 = vector.load %arg7[%c0_15, %c0_16] : memref<8x128xf32, #tpu.memory_space<vmem>>, vector<8x128xf32>
    tpu.vector_store %arg7[%c0_15, %c0_16], %35 {strides = array<i32>} : memref<8x128xf32, #tpu.memory_space<vmem>>, vector<8x128xf32>,
    return
  }
  func.func @transform_0(%arg0: i32, %arg1: i32) -> (i32, i32) {
    %c1_i32 = arith.constant 1 : i32
    %0 = arith.muli %arg0, %c1_i32 : i32
    %1 = arith.addi %0, %arg1 : i32
    %c0_i32 = arith.constant 0 : i32
    %c0_i32_0 = arith.constant 0 : i32
    return %1, %c0_i32 : i32, i32
  }
  func.func @transform_1(%arg0: i32, %arg1: i32) -> (i32, i32) {
    %c0_i32 = arith.constant 0 : i32
    %c0_i32_0 = arith.constant 0 : i32
    %c0_i32_1 = arith.constant 0 : i32
    return %c0_i32, %c0_i32_0 : i32, i32
  }
  func.func @transform_2(%arg0: i32, %arg1: i32) -> (i32, i32) {
    %c0_i32 = arith.constant 0 : i32
    %c0_i32_0 = arith.constant 0 : i32
    return %arg1, %c0_i32 : i32, i32
  }
  func.func @transform_3(%arg0: i32, %arg1: i32) -> (i32, i32) {
    %c0_i32 = arith.constant 0 : i32
    %c0_i32_0 = arith.constant 0 : i32
    %c0_i32_1 = arith.constant 0 : i32
    return %c0_i32, %c0_i32_0 : i32, i32
  }
  func.func @transform_4(%arg0: i32, %arg1: i32) -> (i32, i32) {
    %c0_i32 = arith.constant 0 : i32
    %c0_i32_0 = arith.constant 0 : i32
    %c0_i32_1 = arith.constant 0 : i32
    return %c0_i32, %c0_i32_0 : i32, i32
  }
  func.func @transform_5(%arg0: i32, %arg1: i32) -> (i32, i32) {
    %c1_i32 = arith.constant 1 : i32
    %0 = arith.muli %arg0, %c1_i32 : i32
    %1 = arith.addi %0, %arg1 : i32
    %c0_i32 = arith.constant 0 : i32
    %c0_i32_0 = arith.constant 0 : i32
    return %1, %c0_i32 : i32, i32
  }
}

</mosaic_0001>

<llo_original>
// kernel: tpu_custom_call.1
$region0: #{tpu_custom_call.1}
  #allocation0 [shape = 'u32[]', space=smem, size = 0x4, offset = 0x4, fixed_abs, tag = 'smem constant byte address 0x4 - core index']
  #allocation1 [shape = 'u32[144,128]{1,0:T(1,128)}', space=vmem, size = 0x12000, scoped, tag = 'internal scratch']
  %s0 = inlined_call_operand.hbm [shape: s32[16,1], index: 0, kind: input, shape index: {}]
  %s1 = inlined_call_operand.hbm [shape: f32[32,128], index: 1, kind: input, shape index: {}]
  %s2 = inlined_call_operand.hbm [shape: f32[16,128], index: 2, kind: input, shape index: {}]
  %s3 = inlined_call_operand.hbm [shape: f32[1,128], index: 3, kind: input, shape index: {}]
  %s4 = inlined_call_operand.hbm [shape: f32[1,128], index: 4, kind: input, shape index: {}]
  %s5 = inlined_call_operand.hbm [shape: f32[16,128], index: 5, kind: output, shape index: {}]
  %s6 = sld [smem:[#allocation0]]
  $region73: #{tpu_custom_call.1} parent=0
    _
  %s8 = ssub.s32 1, %s6
  %s9 = scalar_select 0, %s8, %s6
  $region1: #{tpu_custom_call.1} parent=0
    #allocation2 [shape = 'u8[8192]{0}', space=vmem, size = 0x2000, scoped, tag = 'input window, operand 0']
    #allocation3 [shape = 's32[2]{0}', space=sflag, size = 0x8, scoped, tag = 'scoped memory for tpu_custom_call.1']
    #allocation4 [shape = 's32[2]{0}', space=sflag, size = 0x8, scoped, tag = 'scoped memory for tpu_custom_call.1']
    #allocation5 [shape = 'u8[16384]{0}', space=vmem, size = 0x4000, scoped, tag = 'input window, operand 1, single buffered']
    #allocation6 [shape = 's32[1]{0}', space=sflag, size = 0x4, scoped, tag = 'scoped memory for tpu_custom_call.1']
    #allocation7 [shape = 'u8[4096]{0}', space=vmem, size = 0x1000, scoped, tag = 'input window, operand 2, single buffered']
    #allocation8 [shape = 'u8[512]{0}', space=vmem, size = 0x400, scoped, tag = 'input window, operand 3, single buffered']
    #allocation9 [shape = 's32[1]{0}', space=sflag, size = 0x4, scoped, tag = 'scoped memory for tpu_custom_call.1']
    #allocation10 [shape = 'u8[512]{0}', space=vmem, size = 0x400, scoped, tag = 'input window, operand 4, single buffered']
    #allocation11 [shape = 'u8[8192]{0}', space=vmem, size = 0x2000, scoped, tag = 'output window, operand 0']
    %10 = vsyncpa [#allocation3], 0
    %s11 = scalar_lea.sflag [#allocation3], 1
    %12 = vsyncpa %s11, 0
    %13 = vsyncpa [#allocation6], 0
    %14 = vsyncpa [#allocation9], 0
    %15 = vsyncpa [#allocation4], 0
    %s16 = scalar_lea.sflag [#allocation4], 1
    %17 = vsyncpa %s16, 0
    loop: start=0, step=1, limit=4
    $region2: #{tpu_custom_call.1} parent=1 // loop_pre_header
      _
    $region3: #{tpu_custom_call.1} parent=1 // loop_header
      %s19 = sphi 0, %s23
      %p20 = scmp.ge.s32.totalorder %s19, 4
      %s26 = sphi 0, %s38
      %s27 = sphi 0, %s34
      %s28 = sphi 0, %s26
      %s29 = sphi 0, %s27
      %s30 = sphi 0, %s28
      %s31 = sphi 0, %s29
      %s43 = sphi 0, %s45
      %s46 = sphi 0, %s43
      %s47 = sphi 0, %s46
      %s63 = sphi 0, %s47
      %s67 = sphi 0, %s67
      %s69 = sphi 0, %s67
      %s70 = sphi 0, %s69
      %s84 = sphi 0, %s70
      %s90 = sphi 0, %s92
      %s93 = sphi 0, %s90
      %s94 = sphi 0, %s93
      %s110 = sphi 0, %s94
      %s114 = sphi 0, %s114
      %s116 = sphi 0, %s114
      %s117 = sphi 0, %s116
      %s131 = sphi 0, %s117
      %s135 = sphi 0, %s135
      %s137 = sphi 0, %s135
      %s138 = sphi 0, %s137
      %s152 = sphi 0, %s138
      %s160 = sphi 0, %s162
      %s163 = sphi 0, %s160
      %s164 = sphi 0, %s163
      %s180 = sphi 0, %s164
    $region4: #{tpu_custom_call.1} parent=1 // loop_header_branch
      %22 = sbr.rel (%p20) target = $region8
    $region5: #{tpu_custom_call.1} parent=1 // loop_body
      %s24 = ssub.s32 %s19, 1
      %s25 = ssub.s32 %s19, 2
      %s32 = sadd.s32 1, %s27
      %p33 = scmp.ge.s32.totalorder %s32, 1
      %s34 = scalar_select %p33, 0, %s32
      %s35 = sadd.s32 1, %s26
      %s36 = scalar_select %p33, %s35, %s26
      %p37 = scmp.ge.s32.totalorder %s36, 2
      %s38 = scalar_select %p37, 0, %s36
      %s39 = sadd.s32 %s26, %s27
      %s40 = sadd.s32 %s38, %s34
      %s41 = ssub.s32 %s39, %s40
      %p42 = scmp.eq.s32.totalorder %s41, 0
      %s44 = sadd.s32 %s43, 1
      %s45 = scalar_select %p42, %s43, %s44
      %p48 = pneg %p42
      %p49 = scmp.eq.s32.totalorder %s19, 1
      %p50 = por %p48, %p49
      %p51 = scmp.ne.s32.totalorder %s43, %s46
      %p52 = scmp.eq.s32.totalorder %s19, 0
      %p53 = por %p51, %p52
      %p54 = scmp.ne.s32.totalorder %s43, %s46
      %p55 = scmp.eq.s32.totalorder %s24, 1
      %p56 = por %p54, %p55
      %p57 = scmp.ne.s32.totalorder %s46, %s47
      %p58 = scmp.eq.s32.totalorder %s24, 0
      %p59 = por %p57, %p58
      %p60 = scmp.ne.s32.totalorder %s46, %s47
      %p61 = scmp.eq.s32.totalorder %s25, 1
      %p62 = por %p60, %p61
      %p64 = scmp.ne.s32.totalorder %s47, %s63
      %p65 = scmp.eq.s32.totalorder %s25, 0
      %p66 = por %p64, %p65
      %s68 = sadd.s32 %s67, 1
      %p71 = scmp.eq.s32.totalorder %s19, 1
      %p72 = scmp.ne.s32.totalorder %s67, %s69
      %p73 = scmp.eq.s32.totalorder %s19, 0
      %p74 = por %p72, %p73
      %p75 = scmp.ne.s32.totalorder %s67, %s69
      %p76 = scmp.eq.s32.totalorder %s24, 1
      %p77 = por %p75, %p76
      %p78 = scmp.ne.s32.totalorder %s69, %s70
      %p79 = scmp.eq.s32.totalorder %s24, 0
      %p80 = por %p78, %p79
      %p81 = scmp.ne.s32.totalorder %s69, %s70
      %p82 = scmp.eq.s32.totalorder %s25, 1
      %p83 = por %p81, %p82
      %p85 = scmp.ne.s32.totalorder %s70, %s84
      %p86 = scmp.eq.s32.totalorder %s25, 0
      %p87 = por %p85, %p86
      %s88 = ssub.s32 %s27, %s34
      %p89 = scmp.eq.s32.totalorder %s88, 0
      %s91 = sadd.s32 %s90, 1
      %s92 = scalar_select %p89, %s90, %s91
      %p95 = pneg %p89
      %p96 = scmp.eq.s32.totalorder %s19, 1
      %p97 = por %p95, %p96
      %p98 = scmp.ne.s32.totalorder %s90, %s93
      %p99 = scmp.eq.s32.totalorder %s19, 0
      %p100 = por %p98, %p99
      %p101 = scmp.ne.s32.totalorder %s90, %s93
      %p102 = scmp.eq.s32.totalorder %s24, 1
      %p103 = por %p101, %p102
      %p104 = scmp.ne.s32.totalorder %s93, %s94
      %p105 = scmp.eq.s32.totalorder %s24, 0
      %p106 = por %p104, %p105
      %p107 = scmp.ne.s32.totalorder %s93, %s94
      %p108 = scmp.eq.s32.totalorder %s25, 1
      %p109 = por %p107, %p108
      %p111 = scmp.ne.s32.totalorder %s94, %s110
      %p112 = scmp.eq.s32.totalorder %s25, 0
      %p113 = por %p111, %p112
      %s115 = sadd.s32 %s114, 1
      %p118 = scmp.eq.s32.totalorder %s19, 1
      %p119 = scmp.ne.s32.totalorder %s114, %s116
      %p120 = scmp.eq.s32.totalorder %s19, 0
      %p121 = por %p119, %p120
      %p122 = scmp.ne.s32.totalorder %s114, %s116
      %p123 = scmp.eq.s32.totalorder %s24, 1
      %p124 = por %p122, %p123
      %p125 = scmp.ne.s32.totalorder %s116, %s117
      %p126 = scmp.eq.s32.totalorder %s24, 0
      %p127 = por %p125, %p126
      %p128 = scmp.ne.s32.totalorder %s116, %s117
      %p129 = scmp.eq.s32.totalorder %s25, 1
      %p130 = por %p128, %p129
      %p132 = scmp.ne.s32.totalorder %s117, %s131
      %p133 = scmp.eq.s32.totalorder %s25, 0
      %p134 = por %p132, %p133
      %s136 = sadd.s32 %s135, 1
      %p139 = scmp.eq.s32.totalorder %s19, 1
      %p140 = scmp.ne.s32.totalorder %s135, %s137
      %p141 = scmp.eq.s32.totalorder %s19, 0
      %p142 = por %p140, %p141
      %p143 = scmp.ne.s32.totalorder %s135, %s137
      %p144 = scmp.eq.s32.totalorder %s24, 1
      %p145 = por %p143, %p144
      %p146 = scmp.ne.s32.totalorder %s137, %s138
      %p147 = scmp.eq.s32.totalorder %s24, 0
      %p148 = por %p146, %p147
      %p149 = scmp.ne.s32.totalorder %s137, %s138
      %p150 = scmp.eq.s32.totalorder %s25, 1
      %p151 = por %p149, %p150
      %p153 = scmp.ne.s32.totalorder %s138, %s152
      %p154 = scmp.eq.s32.totalorder %s25, 0
      %p155 = por %p153, %p154
      %s156 = sadd.s32 %s26, %s27
      %s157 = sadd.s32 %s38, %s34
      %s158 = ssub.s32 %s156, %s157
      %p159 = scmp.eq.s32.totalorder %s158, 0
      %s161 = sadd.s32 %s160, 1
      %s162 = scalar_select %p159, %s160, %s161
      %p165 = pneg %p159
      %p166 = scmp.eq.s32.totalorder %s19, 1
      %p167 = por %p165, %p166
      %p168 = scmp.ne.s32.totalorder %s160, %s163
      %p169 = scmp.eq.s32.totalorder %s19, 0
      %p170 = por %p168, %p169
      %p171 = scmp.ne.s32.totalorder %s160, %s163
      %p172 = scmp.eq.s32.totalorder %s24, 1
      %p173 = por %p171, %p172
      %p174 = scmp.ne.s32.totalorder %s163, %s164
      %p175 = scmp.eq.s32.totalorder %s24, 0
      %p176 = por %p174, %p175
      %p177 = scmp.ne.s32.totalorder %s163, %s164
      %p178 = scmp.eq.s32.totalorder %s25, 1
      %p179 = por %p177, %p178
      %p181 = scmp.ne.s32.totalorder %s164, %s180
      %p182 = scmp.eq.s32.totalorder %s25, 0
      %p183 = por %p181, %p182
      %p184 = scmp.le.s32.totalorder 1, %s19
      %p185 = scmp.lt.s32.totalorder %s19, 3
      %p186 = pnand %p184, %p185
      %p187 = pneg %p186
      // Predicated region
      $region9: #{tpu_custom_call.1} parent=5 // pred_check
        _
      $region10: #{tpu_custom_call.1} parent=5 // pred_check_branch
        %189 = sbr.rel (%p186) target = $region12
      $region11: #{tpu_custom_call.1} parent=5 // pred_region
        %s190 = ssub.s32 %s19, 1
        // Predicated region
        $region13: #{tpu_custom_call.1} parent=11 // pred_check
          %p191 = pneg %p80
        $region14: #{tpu_custom_call.1} parent=11 // pred_check_branch
          %193 = sbr.rel (%p191) target = $region16
        $region15: #{tpu_custom_call.1} parent=11 // pred_region
          %s195 = ssub.s32 512, 512
          %196 = vsyncadd [#allocation6], %s195
          %s197 = sshll.u32 [#allocation5], 4
          %s198 = int_to_ptr.vmem [resolvable:$true] %s197
          %203 = dma.hbm_to_vmem [thread:$0]  %s1, 512, %s198, [#allocation6], 128, 128, 8
        $region16: #{tpu_custom_call.1} parent=11 // pred_fallthru
          _
        // Predicated region
        $region17: #{tpu_custom_call.1} parent=11 // pred_check
          %p204 = pneg %p106
        $region18: #{tpu_custom_call.1} parent=11 // pred_check_branch
          %206 = sbr.rel (%p204) target = $region20
        $region19: #{tpu_custom_call.1} parent=11 // pred_region
          %s208 = ssub.s32 128, 128
          %209 = vsyncadd [#allocation6], %s208
          %s210 = smul.addr %s29, 128
          %s211 = scalar_lea.hbm %s2, %s210
          %s213 = sshll.u32 [#allocation7], 4
          %s214 = int_to_ptr.vmem [resolvable:$true] %s213
          %216 = dma.hbm_to_vmem [thread:$0]  %s211, 128, %s214, [#allocation6]
        $region20: #{tpu_custom_call.1} parent=11 // pred_fallthru
          _
        // Predicated region
        $region21: #{tpu_custom_call.1} parent=11 // pred_check
          %p217 = pneg %p127
        $region22: #{tpu_custom_call.1} parent=11 // pred_check_branch
          %219 = sbr.rel (%p217) target = $region24
        $region23: #{tpu_custom_call.1} parent=11 // pred_region
          %s221 = ssub.s32 16, 16
          %222 = vsyncadd [#allocation9], %s221
          %s224 = sshll.u32 [#allocation8], 4
          %s225 = int_to_ptr.vmem [resolvable:$true] %s224
          %227 = dma.hbm_to_vmem [thread:$0]  %s3, 16, %s225, [#allocation9]
        $region24: #{tpu_custom_call.1} parent=11 // pred_fallthru
          _
        // Predicated region
        $region25: #{tpu_custom_call.1} parent=11 // pred_check
          %p228 = pneg %p148
        $region26: #{tpu_custom_call.1} parent=11 // pred_check_branch
          %230 = sbr.rel (%p228) target = $region28
        $region27: #{tpu_custom_call.1} parent=11 // pred_region
          %s232 = ssub.s32 16, 16
          %233 = vsyncadd [#allocation9], %s232
          %s235 = sshll.u32 [#allocation10], 4
          %s236 = int_to_ptr.vmem [resolvable:$true] %s235
          %238 = dma.hbm_to_vmem [thread:$0]  %s4, 16, %s236, [#allocation9]
        $region28: #{tpu_custom_call.1} parent=11 // pred_fallthru
          _
      $region12: #{tpu_custom_call.1} parent=5 // pred_fallthru
        _
      %p239 = scmp.lt.s32.totalorder %s19, 2
      // Predicated region
      $region29: #{tpu_custom_call.1} parent=5 // pred_check
        %p240 = pneg %p239
      $region30: #{tpu_custom_call.1} parent=5 // pred_check_branch
        %242 = sbr.rel (%p240) target = $region32
      $region31: #{tpu_custom_call.1} parent=5 // pred_region
        // Predicated region
        $region33: #{tpu_custom_call.1} parent=31 // pred_check
          %p243 = pneg %p53
        $region34: #{tpu_custom_call.1} parent=31 // pred_check_branch
          %245 = sbr.rel (%p243) target = $region36
        $region35: #{tpu_custom_call.1} parent=31 // pred_region
          %s246 = sand.u32 %s43, 1
          %s247 = scalar_lea.sflag [#allocation3], %s246
          %s248 = sand.u32 %s43, 1
          %s249 = smul.addr %s248, 8
          %s250 = scalar_lea.vmem [#allocation2], %s249
          %s251 = sadd.s32 %s26, %s27
          %s253 = ssub.s32 128, 128
          %254 = vsyncadd %s247, %s253
          %s255 = smul.addr %s251, 128
          %s256 = scalar_lea.hbm %s0, %s255
          %s258 = sshll.u32 %s250, 4
          %s259 = int_to_ptr.vmem [resolvable:$true] %s258
          %261 = dma.hbm_to_vmem [thread:$0]  %s256, 128, %s259, %s247
        $region36: #{tpu_custom_call.1} parent=31 // pred_fallthru
          _
      $region32: #{tpu_custom_call.1} parent=5 // pred_fallthru
        _
      %p262 = scmp.le.s32.totalorder 1, %s19
      %p263 = scmp.lt.s32.totalorder %s19, 3
      %p264 = pnand %p262, %p263
      %p265 = pneg %p264
      // Predicated region
      $region37: #{tpu_custom_call.1} parent=5 // pred_check
        _
      $region38: #{tpu_custom_call.1} parent=5 // pred_check_branch
        %267 = sbr.rel (%p264) target = $region40
      $region39: #{tpu_custom_call.1} parent=5 // pred_region
        %s268 = ssub.s32 %s19, 1
        %s269 = sand.u32 %s46, 1
        %s270 = scalar_lea.sflag [#allocation3], %s269
        %s271 = sand.u32 %s46, 1
        %s272 = smul.addr %s271, 8
        %s273 = scalar_lea.vmem [#allocation2], %s272
        // Predicated region
        $region41: #{tpu_custom_call.1} parent=39 // pred_check
          %p274 = pneg %p59
        $region42: #{tpu_custom_call.1} parent=39 // pred_check_branch
          %276 = sbr.rel (%p274) target = $region44
        $region43: #{tpu_custom_call.1} parent=39 // pred_region
          %277 = dma.done %s270, 128
        $region44: #{tpu_custom_call.1} parent=39 // pred_fallthru
          _
        // Predicated region
        $region45: #{tpu_custom_call.1} parent=39 // pred_check
          %p278 = pneg %p80
        $region46: #{tpu_custom_call.1} parent=39 // pred_check_branch
          %280 = sbr.rel (%p278) target = $region48
        $region47: #{tpu_custom_call.1} parent=39 // pred_region
          %281 = dma.done [#allocation6], 512
        $region48: #{tpu_custom_call.1} parent=39 // pred_fallthru
          _
        // Predicated region
        $region49: #{tpu_custom_call.1} parent=39 // pred_check
          %p282 = pneg %p106
        $region50: #{tpu_custom_call.1} parent=39 // pred_check_branch
          %284 = sbr.rel (%p282) target = $region52
        $region51: #{tpu_custom_call.1} parent=39 // pred_region
          %285 = dma.done [#allocation6], 128
        $region52: #{tpu_custom_call.1} parent=39 // pred_fallthru
          _
        // Predicated region
        $region53: #{tpu_custom_call.1} parent=39 // pred_check
          %p286 = pneg %p127
        $region54: #{tpu_custom_call.1} parent=39 // pred_check_branch
          %288 = sbr.rel (%p286) target = $region56
        $region55: #{tpu_custom_call.1} parent=39 // pred_region
          %289 = dma.done [#allocation9], 16
        $region56: #{tpu_custom_call.1} parent=39 // pred_fallthru
          _
        // Predicated region
        $region57: #{tpu_custom_call.1} parent=39 // pred_check
          %p290 = pneg %p148
        $region58: #{tpu_custom_call.1} parent=39 // pred_check_branch
          %292 = sbr.rel (%p290) target = $region60
        $region59: #{tpu_custom_call.1} parent=39 // pred_region
          %293 = dma.done [#allocation9], 16
        $region60: #{tpu_custom_call.1} parent=39 // pred_fallthru
          _
        %s294 = sand.u32 %s46, 1
        %s295 = scalar_lea.sflag [#allocation3], %s294
        %s296 = sand.u32 %s46, 1
        %s297 = smul.addr %s296, 8
        %s298 = scalar_lea.vmem [#allocation2], %s297
        %p299 = pneg %p59
        %p300 = pneg %p56
        %p301 = pneg %p80
        %p302 = pneg %p77
        %p303 = pneg %p106
        %p304 = pneg %p103
        %p305 = pneg %p127
        %p306 = pneg %p124
        %p307 = pneg %p148
        %p308 = pneg %p145
        %p309 = pneg %p176
        %p310 = pneg %p173
        %s311 = sand.u32 %s163, 1
        %s312 = scalar_lea.sflag [#allocation4], %s311
        %s313 = sand.u32 %s163, 1
        %s314 = smul.addr %s313, 8
        %s315 = scalar_lea.vmem [#allocation11], %s314
        %s316 = sadd.s32 %s28, %s29
        %s317 = sadd.s32 %s28, %s29
        %v318 = vld [vmem:[%s273] sm:$0xff]
        %v319 = vlaneseq
        %v320 = vand.u32 %v319, 127
        %321 = vset.pattern.permute.xlu0 0
        %322 = vperm.xlu0 %321, %v318
        %v323 = vpop.permute.xlu0 %322
        %vm324 = vcmp.eq.s32.totalorder %v323, %v320
        %v325 = vsel %vm324, 1, 0
        %v326 = vcvt.s32.f32 %v325
        %v327 = vld [vmem:[#allocation5] sm:$0xff]
        %v328 = vld [vmem:[#allocation5 + $0x8] sm:$0xff]
        %v329 = vld [vmem:[#allocation5 + $0x10] sm:$0xff]
        %v330 = vld [vmem:[#allocation5 + $0x18] sm:$0xff]
        %v331 = vld [vmem:[#allocation7] sm:$0xff]
        %vm332 = vcmask 261120
        %v334 = vsel %vm332, %v326, 0
        %336 = vmatprep.subr.mxu0 0.0
        %337 = vmatpush1.msra.mxu0 %v327
        %338 = vmatprep.subr.mxu0 0.0
        %339 = vmatpush1.msra.mxu0 %v328
        %340 = vmatprep.subr.mxu0 0.0
        %341 = vmatpush1.msra.mxu0 %v329
        %342 = vmatprep.subr.mxu0 0.0
        %343 = vmatpush1.msra.mxu0 %v330
        %344 = vmatprep.subr.mxu0 0.0
        %345 = vmatpush1.msra.mxu0 0.0
        %346 = vmatprep.subr.mxu0 0.0
        %347 = vmatpush1.msra.mxu0 0.0
        %348 = vmatprep.subr.mxu0 0.0
        %349 = vmatpush1.msra.mxu0 0.0
        %350 = vmatprep.subr.mxu0 0.0
        %351 = vmatpush1.msra.mxu0 0.0
        %352 = vmatprep.subr.mxu0 0.0
        %353 = vmatpush1.msra.mxu0 0.0
        %354 = vmatprep.subr.mxu0 0.0
        %355 = vmatpush1.msra.mxu0 0.0
        %356 = vmatprep.subr.mxu0 0.0
        %357 = vmatpush1.msra.mxu0 0.0
        %358 = vmatprep.subr.mxu0 0.0
        %359 = vmatpush1.msra.mxu0 0.0
        %360 = vmatprep.subr.mxu0 0.0
        %361 = vmatpush1.msra.mxu0 0.0
        %362 = vmatprep.subr.mxu0 0.0
        %363 = vmatpush1.msra.mxu0 0.0
        %364 = vmatprep.subr.mxu0 0.0
        %365 = vmatpush1.msra.mxu0 0.0
        %366 = vmatprep.subr.mxu0 0.0
        %367 = vmatpush1.msra.mxu0 0.0
        %368 = vmatprep.subr.mxu0 0.0
        %369 = vmatpush1.msra.mxu0 0.0
        %370 = vmatprep.subr.mxu0 0.0
        %371 = vmatpush1.msra.mxu0 0.0
        %372 = vmatprep.subr.mxu0 0.0
        %373 = vmatpush1.msra.mxu0 0.0
        %374 = vmatprep.subr.mxu0 0.0
        %375 = vmatpush1.msra.mxu0 0.0
        %376 = vmatprep.subr.mxu0 0.0
        %377 = vmatpush1.msra.mxu0 0.0
        %378 = vmatprep.subr.mxu0 0.0
        %379 = vmatpush1.msra.mxu0 0.0
        %380 = vmatprep.subr.mxu0 0.0
        %381 = vmatpush1.msra.mxu0 0.0
        %382 = vmatprep.subr.mxu0 0.0
        %383 = vmatpush1.msra.mxu0 0.0
        %384 = vmatprep.subr.mxu0 0.0
        %385 = vmatpush1.msra.mxu0 0.0
        %386 = vmatprep.subr.mxu0 0.0
        %387 = vmatpush1.msra.mxu0 0.0
        %388 = vmatprep.subr.mxu0 0.0
        %389 = vmatpush1.msra.mxu0 0.0
        %390 = vmatprep.subr.mxu0 0.0
        %391 = vmatpush1.msra.mxu0 0.0
        %392 = vmatprep.subr.mxu0 0.0
        %393 = vmatpush1.msra.mxu0 0.0
        %394 = vmatprep.subr.mxu0 0.0
        %395 = vmatpush1.msra.mxu0 0.0
        %396 = vmatprep.subr.mxu0 0.0
        %397 = vmatpush1.msra.mxu0 0.0
        %398 = vmatprep.subr.mxu0 0.0
        %399 = vmatpush1.msra.mxu0 0.0
        %400 = vmatprep.mubr.f32.mxu0 0.0
        %401 = vmatmul.mubr.f32.gmra.mrb[0].mxu0 %v334
        %v402 = vpop.f32.mrb[0].mxu0
        %v403 = vadd.f32 %v331, %v402
        %v404 = vpop.f32.mrb[0].mxu0
        %405 = vdwg.mxu0
        %v406 = vld [vmem:[#allocation8] sm:$0x1]
        %v407 = vld [vmem:[#allocation10] sm:$0x1]
        %408 = vadd.xlane.f32.xlu0 %v403
        %v409 = vpop.xlane.xlu0 %408
        %v410 = vmul.f32 %v409, 0.03125
        %v411 = vmul.f32 %v403, %v403
        %412 = vadd.xlane.f32.xlu0 %v411
        %v413 = vpop.xlane.xlu0 %412
        %v414 = vmul.f32 %v413, 0.03125
        %v415 = vmul.f32 %v410, %v410
        %v416 = vsub.f32 %v414, %v415
        %v417 = vmax.f32 %v416, 0.0
        %v418 = vsub.f32 %v403, %v410
        %v419 = vadd.f32 %v417, 1e-05
        %v420 = vrsqrt.pop %v419
        %v421 = vmul.f32 %v418, %v420
        %v423 = vlaneseq
        %v424 = vshrl.u32 %v423, 7
        %v425 = vsub.s32 0, %v424
        %v426 = vrot.slane %v406, %v425
        %v428 = vmul.f32 %v421, %v426
        %v430 = vlaneseq
        %v431 = vshrl.u32 %v430, 7
        %v432 = vsub.s32 0, %v431
        %v433 = vrot.slane %v407, %v432
        %v435 = vadd.f32 %v428, %v433
        %436 = vst [vmem:[%s315] sm:$0xff] %v435
        %s437 = sand.u32 %s163, 1
        %s438 = scalar_lea.sflag [#allocation4], %s437
        %s439 = sand.u32 %s163, 1
        %s440 = smul.addr %s439, 8
        %s441 = scalar_lea.vmem [#allocation11], %s440
        // Predicated region
        $region61: #{tpu_custom_call.1} parent=39 // pred_check
          %p442 = pneg %p173
        $region62: #{tpu_custom_call.1} parent=39 // pred_check_branch
          %444 = sbr.rel (%p442) target = $region64
        $region63: #{tpu_custom_call.1} parent=39 // pred_region
          %s445 = sadd.s32 %s28, %s29
          %s447 = ssub.s32 128, 128
          %448 = vsyncadd %s438, %s447
          %s449 = smul.addr %s445, 128
          %s450 = scalar_lea.hbm %s5, %s449
          %s452 = sshll.u32 %s441, 4
          %s453 = int_to_ptr.vmem [resolvable:$true] %s452
          %455 = dma.vmem_to_hbm [thread:$0]  %s453, 128, %s450, %s438
        $region64: #{tpu_custom_call.1} parent=39 // pred_fallthru
          _
      $region40: #{tpu_custom_call.1} parent=5 // pred_fallthru
        _
      %p456 = scmp.le.s32.totalorder 2, %s19
      // Predicated region
      $region65: #{tpu_custom_call.1} parent=5 // pred_check
        %p457 = pneg %p456
      $region66: #{tpu_custom_call.1} parent=5 // pred_check_branch
        %459 = sbr.rel (%p457) target = $region68
      $region67: #{tpu_custom_call.1} parent=5 // pred_region
        %s460 = ssub.s32 %s19, 2
        // Predicated region
        $region69: #{tpu_custom_call.1} parent=67 // pred_check
          %p461 = pneg %p179
        $region70: #{tpu_custom_call.1} parent=67 // pred_check_branch
          %463 = sbr.rel (%p461) target = $region72
        $region71: #{tpu_custom_call.1} parent=67 // pred_region
          %s464 = sand.u32 %s164, 1
          %s465 = scalar_lea.sflag [#allocation4], %s464
          %s466 = sand.u32 %s164, 1
          %s467 = smul.addr %s466, 8
          %s468 = scalar_lea.vmem [#allocation11], %s467
          %469 = dma.done %s465, 128
        $region72: #{tpu_custom_call.1} parent=67 // pred_fallthru
          _
      $region68: #{tpu_custom_call.1} parent=5 // pred_fallthru
        _
    $region6: #{tpu_custom_call.1} parent=1 // loop_footer
      %s23 = sadd.s32 1, %s19
    $region7: #{tpu_custom_call.1} parent=1 // loop_footer_branch
      %18 = sbr.rel target = $region3
    $region8: #{tpu_custom_call.1} parent=1 // loop_exit
      _
    %470 = vsyncpa [#allocation3], 1
    %s471 = scalar_lea.sflag [#allocation3], 1
    %472 = vsyncpa %s471, 1
    %473 = vsyncpa [#allocation6], 1
    %474 = vsyncpa [#allocation9], 1
    %475 = vsyncpa [#allocation4], 1
    %s476 = scalar_lea.sflag [#allocation4], 1
    %477 = vsyncpa %s476, 1

</llo_original>
